<compile_context>
chip_gen: v6e
topology: v6e:2x2x1
jax: 0.10.0
libtpu: 0.0.40
codegen_flags: <defaults>
</compile_context>

<pallas_src>
import math

import jax
import jax.numpy as jnp
from jax.experimental import pallas as pl
from jax.experimental.pallas import tpu as pltpu


_VMEM = pl.BlockSpec(memory_space=pltpu.MemorySpace.VMEM)


def _round_up(x, m):
    return ((x + m - 1) // m) * m


# ----------------------------------------------------------------------------
# Fused kernel: T timesteps x num_layers GRU + linear + softmax in one launch.
# ----------------------------------------------------------------------------
def _make_kernel(num_layers, input_size, H, O, T, HP, XP, OP):
    """Build the fused kernel for static sizes.

    Ref layout (inputs, outputs, scratch):
      x_ref      (T, input_size)       one-hot characters (T == 1 for forward())
      hid_ref    (num_layers, H)       initial hidden state
      w_refs[l]  (XP + HP, 4*HP)       [x-block ; h-block] rows, lane-aligned
                                       gate blocks [r | z | i_n | h_n] columns
      b_refs[l]  (1, 4*HP)             [b_r_sum | b_z_sum | b_in | b_hn]
      wout_ref   (HP, OP)              output head, zero padded
      bout_ref   (1, OP)               real bias in [:O], -1e30 in padded lanes
      probs_ref  (1, O)                softmax output of the LAST timestep
      hn_ref     (num_layers, H)       final hidden state
      lhs_ref    (1, XP + HP)          scratch: matmul LHS  [layer input | h_prev]
      hstate_ref (num_layers, HP)      scratch: padded hidden state (pad lanes = 0)
    """

    def kernel(*refs):
        x_ref, hid_ref = refs[0], refs[1]
        w_refs = refs[2:2 + num_layers]
        b_refs = refs[2 + num_layers:2 + 2 * num_layers]
        wout_ref = refs[2 + 2 * num_layers]
        bout_ref = refs[3 + 2 * num_layers]
        probs_ref = refs[4 + 2 * num_layers]
        hn_ref = refs[5 + 2 * num_layers]
        lhs_ref = refs[6 + 2 * num_layers]
        hstate_ref = refs[7 + 2 * num_layers]

        # Initialize scratch state once (padded lanes stay exactly zero).
        lhs_ref[...] = jnp.zeros_like(lhs_ref)
        hstate_ref[...] = jnp.zeros_like(hstate_ref)
        hstate_ref[:, 0:H] = hid_ref[...]

        def step(t, carry):
            # Layer-0 input: this timestep's character in the leading lanes.
            lhs_ref[:, 0:XP] = jnp.zeros((1, XP), jnp.float32)
            lhs_ref[:, 0:input_size] = x_ref[pl.ds(t, 1), :]

            for l in range(num_layers):
                h_prev = hstate_ref[pl.ds(l, 1), :]          # (1, HP), pad lanes 0
                lhs_ref[:, XP:XP + HP] = h_prev              # aligned 128-lane store

                # Single fused MXU matmul for all gates of this layer.
                g = jnp.dot(lhs_ref[...], w_refs[l][...],
                            preferred_element_type=jnp.float32) + b_refs[l][...]

                # Lane-aligned gate slices (each block is 128 lanes wide).
                r = jax.nn.sigmoid(g[:, 0:HP])
                z = jax.nn.sigmoid(g[:, HP:2 * HP])
                n = jnp.tanh(g[:, 2 * HP:3 * HP] + r * g[:, 3 * HP:4 * HP])
                h_new = (1.0 - z) * n + z * h_prev           # pad lanes stay 0

                hstate_ref[pl.ds(l, 1), :] = h_new
                if l + 1 < num_layers:
                    # Next layer's input (extra x-block lanes have zero weights).
                    lhs_ref[:, 0:HP] = h_new
            return carry

        jax.lax.fori_loop(0, T, step, 0, unroll=(T <= 16))

        # Output head on the last layer's hidden state: linear + stable softmax.
        h_last = hstate_ref[pl.ds(num_layers - 1, 1), :]     # (1, HP)
        logits = jnp.dot(h_last, wout_ref[...],
                         preferred_element_type=jnp.float32) + bout_ref[...]
        m = jnp.max(logits, axis=-1, keepdims=True)
        e = jnp.exp(logits - m)                              # padded lanes -> 0
        inv = pl.reciprocal(jnp.sum(e, axis=-1, keepdims=True), approx=True)
        probs_ref[...] = (e * inv)[:, 0:O]
        hn_ref[...] = hstate_ref[:, 0:H]

    return kernel


def _gru_fused_call(params, x_seq, h0_2d):
    """x_seq: (T, input_size) f32; h0_2d: (num_layers, hidden_size) f32."""
    L = params["num_layers"]
    I = params["input_size"]
    H = params["hidden_size"]
    O = params["output_size"]
    HP, XP, OP = params["HP"], params["XP"], params["OP"]
    T = x_seq.shape[0]

    kernel = _make_kernel(L, I, H, O, T, HP, XP, OP)
    args = [x_seq, h0_2d, *params["wcat"], *params["bcat"],
            params["wout_pad"], params["bout_pad"]]

    probs, hn = pl.pallas_call(
        kernel,
        out_shape=(jax.ShapeDtypeStruct((1, O), jnp.float32),
                   jax.ShapeDtypeStruct((L, H), jnp.float32)),
        in_specs=[_VMEM] * len(args),
        out_specs=(_VMEM, _VMEM),
        scratch_shapes=[pltpu.VMEM((1, XP + HP), jnp.float32),
                        pltpu.VMEM((L, HP), jnp.float32)],
    )(*args)
    return probs, hn


# ----------------------------------------------------------------------------
# Parameter init (torch-like raw weights + packed lane-aligned kernel weights)
# ----------------------------------------------------------------------------
def init_params(key, input_size, hidden_size, output_size, num_layers):
    H = hidden_size
    HP = _round_up(H, 128)
    XP = max(_round_up(input_size, 128), HP)
    OP = _round_up(output_size, 128)
    k = 1.0 / math.sqrt(H)
    keys = jax.random.split(key, num_layers * 4 + 2)

    raw_layers, wcats, bcats = [], [], []
    idx = 0
    for layer in range(num_layers):
        in_sz = input_size if layer == 0 else H
        w_ih = jax.random.uniform(keys[idx], (3 * H, in_sz), jnp.float32, -k, k); idx += 1
        w_hh = jax.random.uniform(keys[idx], (3 * H, H), jnp.float32, -k, k); idx += 1
        b_ih = jax.random.uniform(keys[idx], (3 * H,), jnp.float32, -k, k); idx += 1
        b_hh = jax.random.uniform(keys[idx], (3 * H,), jnp.float32, -k, k); idx += 1
        raw_layers.append(dict(w_ih=w_ih, w_hh=w_hh, b_ih=b_ih, b_hh=b_hh))

        # Packed weight: rows [x-block (XP) ; h-block (HP)],
        # cols = 4 lane-aligned gate blocks [r | z | i_n | h_n], each HP wide.
        wcat = jnp.zeros((XP + HP, 4 * HP), jnp.float32)
        wcat = wcat.at[0:in_sz, 0:H].set(w_ih[0:H].T)                       # r from x
        wcat = wcat.at[0:in_sz, HP:HP + H].set(w_ih[H:2 * H].T)             # z from x
        wcat = wcat.at[0:in_sz, 2 * HP:2 * HP + H].set(w_ih[2 * H:3 * H].T) # i_n
        wcat = wcat.at[XP:XP + H, 0:H].set(w_hh[0:H].T)                     # r from h
        wcat = wcat.at[XP:XP + H, HP:HP + H].set(w_hh[H:2 * H].T)           # z from h
        wcat = wcat.at[XP:XP + H, 3 * HP:3 * HP + H].set(w_hh[2 * H:3 * H].T)  # h_n

        bcat = jnp.zeros((1, 4 * HP), jnp.float32)
        bcat = bcat.at[0, 0:H].set(b_ih[0:H] + b_hh[0:H])                   # r biases merged
        bcat = bcat.at[0, HP:HP + H].set(b_ih[H:2 * H] + b_hh[H:2 * H])     # z biases merged
        bcat = bcat.at[0, 2 * HP:2 * HP + H].set(b_ih[2 * H:3 * H])         # b_in
        bcat = bcat.at[0, 3 * HP:3 * HP + H].set(b_hh[2 * H:3 * H])         # b_hn (kept separate)
        wcats.append(wcat)
        bcats.append(bcat)

    w_out = jax.random.uniform(keys[idx], (output_size, H), jnp.float32, -k, k); idx += 1
    b_out = jax.random.uniform(keys[idx], (output_size,), jnp.float32, -k, k)
    wout_pad = jnp.zeros((HP, OP), jnp.float32).at[0:H, 0:output_size].set(w_out.T)
    bout_pad = jnp.full((1, OP), -1e30, jnp.float32).at[0, 0:output_size].set(b_out)

    return dict(
        input_size=input_size, hidden_size=H, output_size=output_size,
        num_layers=num_layers, HP=HP, XP=XP, OP=OP,
        wcat=wcats, bcat=bcats, wout_pad=wout_pad, bout_pad=bout_pad,
        raw_layers=raw_layers, raw_w_out=w_out, raw_b_out=b_out)


def init_hidden(num_layers, hidden_size):
    return jnp.zeros((num_layers, 1, hidden_size), jnp.float32)


# ----------------------------------------------------------------------------
# Public API mirroring the torch module
# ----------------------------------------------------------------------------
def gru_forward(params, x, hidden):
    """Equivalent of GRU.forward(input, hidden) — one fused pallas_call.

    x:      (1, input_size)
    hidden: (num_layers, 1, hidden_size)
    returns (softmax_out (1, 1, output_size), hn (num_layers, 1, hidden_size))
    """
    L, H = params["num_layers"], params["hidden_size"]
    probs, hn = _gru_fused_call(params, x.astype(jnp.float32),
                                hidden.reshape(L, H).astype(jnp.float32))
    return probs[None, :, :], hn[:, None, :]


def gru_predict_name(params, name_onehot):
    """Equivalent of GRU.predict_one_name: whole name in ONE kernel launch.

    name_onehot: (T, input_size)  ->  (1, output_size) softmax of last timestep.
    """
    L, H = params["num_layers"], params["hidden_size"]
    h0 = jnp.zeros((L, H), jnp.float32)
    probs, _ = _gru_fused_call(params, name_onehot.astype(jnp.float32), h0)
    return probs


# ----------------------------------------------------------------------------
# Pure-JAX reference (for correctness checks)
# ----------------------------------------------------------------------------
def gru_ref_step(params, x, hidden):
    """x: (1, I); hidden: (L, 1, H) -> (probs (1,1,O), hn (L,1,H))."""
    H = params["hidden_size"]
    hi = jax.lax.Precision.HIGHEST
    h_in = x.astype(jnp.float32)
    new_h = []
    for l, lp in enumerate(params["raw_layers"]):
        gi = jnp.dot(h_in, lp["w_ih"].T, precision=hi) + lp["b_ih"][None, :]
        gh = jnp.dot(hidden[l], lp["w_hh"].T, precision=hi) + lp["b_hh"][None, :]
        r = jax.nn.sigmoid(gi[:, 0:H] + gh[:, 0:H])
        z = jax.nn.sigmoid(gi[:, H:2 * H] + gh[:, H:2 * H])
        n = jnp.tanh(gi[:, 2 * H:3 * H] + r * gh[:, 2 * H:3 * H])
        h_new = (1.0 - z) * n + z * hidden[l]
        new_h.append(h_new)
        h_in = h_new
    hn = jnp.stack(new_h, axis=0)
    logits = jnp.dot(h_in, params["raw_w_out"].T, precision=hi) + params["raw_b_out"][None, :]
    return jax.nn.softmax(logits, axis=-1)[None, :, :], hn


# TODO(synk): training bits of the module (NLLLoss criterion, optimizer,
# step_one_epoch / backward) are out of scope for the forward-pass kernel.

if __name__ == "__main__":
    input_size = 64     # n_letters (one-hot alphabet size)
    hidden_size = 32
    output_size = 16    # number of language categories
    num_layers = 2      # exercise the multi-layer path

    key = jax.random.PRNGKey(0)
    pkey, xkey, hkey = jax.random.split(key, 3)
    params = init_params(pkey, input_size, hidden_size, output_size, num_layers)

    # ---- single-step forward (module.forward semantics) ----
    letter = jax.random.randint(xkey, (), 0, input_size)
    x = jax.nn.one_hot(letter, input_size, dtype=jnp.float32)[None, :]
    h0 = 0.1 * jax.random.normal(hkey, (num_layers, 1, hidden_size), jnp.float32)

    out, hn = gru_forward(params, x, h0)
    out = jax.block_until_ready(out)
    hn = jax.block_until_ready(hn)
    out_ref, hn_ref = gru_ref_step(params, x, h0)

    assert out.shape == (1, 1, output_size)
    assert hn.shape == (num_layers, 1, hidden_size)
    assert jnp.allclose(out, out_ref, atol=2e-3)
    assert jnp.allclose(hn, hn_ref, atol=2e-3)
    assert jnp.allclose(jnp.sum(out), 1.0, atol=2e-3)   # softmax sums to ~1

    # ---- whole-name prediction: all T characters in one fused kernel ----
    T = 7
    letters = jax.random.randint(jax.random.PRNGKey(1), (T,), 0, input_size)
    name = jax.nn.one_hot(letters, input_size, dtype=jnp.float32)   # (T, I)
    probs_seq = jax.block_until_ready(gru_predict_name(params, name))

    h = init_hidden(num_layers, hidden_size)
    p_ref = None
    for t in range(T):
        p_ref, h = gru_ref_step(params, name[t:t + 1, :], h)
    assert probs_seq.shape == (1, output_size)
    assert jnp.allclose(probs_seq, p_ref[0], atol=2e-3)

    print("KERNEL_OK")
</pallas_src>

<mosaic_0001>
module attributes {stable_mosaic.version = 11 : i64} {
  func.func @kernel(%arg0: memref<1x64xf32, #tpu.memory_space<vmem>>, %arg1: memref<2x32xf32, #tpu.memory_space<vmem>>, %arg2: memref<256x512xf32, #tpu.memory_space<vmem>>, %arg3: memref<256x512xf32, #tpu.memory_space<vmem>>, %arg4: memref<1x512xf32, #tpu.memory_space<vmem>>, %arg5: memref<1x512xf32, #tpu.memory_space<vmem>>, %arg6: memref<128x128xf32, #tpu.memory_space<vmem>>, %arg7: memref<1x128xf32, #tpu.memory_space<vmem>>, %arg8: memref<1x16xf32, #tpu.memory_space<vmem>>, %arg9: memref<2x32xf32, #tpu.memory_space<vmem>>, %arg10: memref<1x256xf32, #tpu.memory_space<vmem>>, %arg11: memref<2x128xf32, #tpu.memory_space<vmem>>) attributes {dimension_semantics = [], scalar_prefetch = 0 : i64, scratch_operands = 2 : i64, tpu.core_type = #tpu.core_type<tc>} {
    %cst = arith.constant 0.000000e+00 : f32
    %0 = vector.broadcast %cst : f32 to vector<1x256xf32>
    %c0 = arith.constant 0 : index
    %c0_0 = arith.constant 0 : index
    %1 = vector.load %arg10[%c0, %c0_0] : memref<1x256xf32, #tpu.memory_space<vmem>>, vector<1x256xf32>
    tpu.vector_store %arg10[%c0, %c0_0], %0 {strides = array<i32>} : memref<1x256xf32, #tpu.memory_space<vmem>>, vector<1x256xf32>,
    %cst_1 = arith.constant 0.000000e+00 : f32
    %2 = vector.broadcast %cst_1 : f32 to vector<2x128xf32>
    %c0_2 = arith.constant 0 : index
    %c0_3 = arith.constant 0 : index
    %3 = vector.load %arg11[%c0_2, %c0_3] : memref<2x128xf32, #tpu.memory_space<vmem>>, vector<2x128xf32>
    tpu.vector_store %arg11[%c0_2, %c0_3], %2 {strides = array<i32>} : memref<2x128xf32, #tpu.memory_space<vmem>>, vector<2x128xf32>,
    %c0_4 = arith.constant 0 : index
    %c0_5 = arith.constant 0 : index
    %4 = vector.load %arg1[%c0_4, %c0_5] : memref<2x32xf32, #tpu.memory_space<vmem>>, vector<2x32xf32>
    %c0_6 = arith.constant 0 : index
    %c0_7 = arith.constant 0 : index
    %5 = vector.load %arg11[%c0_6, %c0_7] : memref<2x128xf32, #tpu.memory_space<vmem>>, vector<2x32xf32>
    tpu.vector_store %arg11[%c0_6, %c0_7], %4 {strides = array<i32>} : memref<2x128xf32, #tpu.memory_space<vmem>>, vector<2x32xf32>,
    %c0_i32 = arith.constant 0 : i32
    %cst_8 = arith.constant 0.000000e+00 : f32
    %6 = vector.broadcast %cst_8 : f32 to vector<1x128xf32>
    %c0_9 = arith.constant 0 : index
    %c0_10 = arith.constant 0 : index
    %7 = vector.load %arg10[%c0_9, %c0_10] : memref<1x256xf32, #tpu.memory_space<vmem>>, vector<1x128xf32>
    tpu.vector_store %arg10[%c0_9, %c0_10], %6 {strides = array<i32>} : memref<1x256xf32, #tpu.memory_space<vmem>>, vector<1x128xf32>,
    %8 = arith.index_cast %c0_i32 : i32 to index
    %c0_11 = arith.constant 0 : index
    %9 = vector.load %arg0[%8, %c0_11] : memref<1x64xf32, #tpu.memory_space<vmem>>, vector<1x64xf32>
    %c0_12 = arith.constant 0 : index
    %c0_13 = arith.constant 0 : index
    %10 = vector.load %arg10[%c0_12, %c0_13] : memref<1x256xf32, #tpu.memory_space<vmem>>, vector<1x64xf32>
    tpu.vector_store %arg10[%c0_12, %c0_13], %9 {strides = array<i32>} : memref<1x256xf32, #tpu.memory_space<vmem>>, vector<1x64xf32>,
    %c0_14 = arith.constant 0 : index
    %c0_15 = arith.constant 0 : index
    %11 = vector.load %arg11[%c0_14, %c0_15] : memref<2x128xf32, #tpu.memory_space<vmem>>, vector<1x128xf32>
    %c0_16 = arith.constant 0 : index
    %c128 = arith.constant 128 : index
    %12 = vector.load %arg10[%c0_16, %c128] : memref<1x256xf32, #tpu.memory_space<vmem>>, vector<1x128xf32>
    tpu.vector_store %arg10[%c0_16, %c128], %11 {strides = array<i32>} : memref<1x256xf32, #tpu.memory_space<vmem>>, vector<1x128xf32>,
    %c0_17 = arith.constant 0 : index
    %c0_18 = arith.constant 0 : index
    %13 = vector.load %arg10[%c0_17, %c0_18] : memref<1x256xf32, #tpu.memory_space<vmem>>, vector<1x256xf32>
    %c0_19 = arith.constant 0 : index
    %c0_20 = arith.constant 0 : index
    %14 = vector.load %arg2[%c0_19, %c0_20] : memref<256x512xf32, #tpu.memory_space<vmem>>, vector<256x512xf32>
    %cst_21 = arith.constant dense<0.000000e+00> : vector<1x512xf32>
    %15 = tpu.matmul %13, %14, %cst_21 {dimension_numbers = #tpu.dot_dimension_numbers<[1], [0], [0], [1], [0, 0, 1, 1], [], []>} : vector<1x256xf32>, vector<256x512xf32>, vector<1x512xf32> -> vector<1x512xf32>
    %c0_22 = arith.constant 0 : index
    %c0_23 = arith.constant 0 : index
    %16 = vector.load %arg4[%c0_22, %c0_23] : memref<1x512xf32, #tpu.memory_space<vmem>>, vector<1x512xf32>
    %17 = arith.addf %15, %16 : vector<1x512xf32>
    %18 = vector.extract_strided_slice %17 {offsets = [0, 0], sizes = [1, 128], strides = [1, 1]} : vector<1x512xf32> to vector<1x128xf32>
    %19 = arith.negf %18 : vector<1x128xf32>
    %20 = math.exp %19 : vector<1x128xf32>
    %cst_24 = arith.constant 1.000000e+00 : f32
    %21 = vector.broadcast %cst_24 : f32 to vector<1x128xf32>
    %22 = arith.addf %21, %20 : vector<1x128xf32>
    %23 = arith.divf %21, %22 : vector<1x128xf32>
    %24 = vector.extract_strided_slice %17 {offsets = [0, 128], sizes = [1, 128], strides = [1, 1]} : vector<1x512xf32> to vector<1x128xf32>
    %25 = arith.negf %24 : vector<1x128xf32>
    %26 = math.exp %25 : vector<1x128xf32>
    %cst_25 = arith.constant 1.000000e+00 : f32
    %27 = vector.broadcast %cst_25 : f32 to vector<1x128xf32>
    %28 = arith.addf %27, %26 : vector<1x128xf32>
    %29 = arith.divf %27, %28 : vector<1x128xf32>
    %30 = vector.extract_strided_slice %17 {offsets = [0, 256], sizes = [1, 128], strides = [1, 1]} : vector<1x512xf32> to vector<1x128xf32>
    %31 = vector.extract_strided_slice %17 {offsets = [0, 384], sizes = [1, 128], strides = [1, 1]} : vector<1x512xf32> to vector<1x128xf32>
    %32 = arith.mulf %23, %31 : vector<1x128xf32>
    %33 = arith.addf %30, %32 : vector<1x128xf32>
    %34 = math.tanh %33 : vector<1x128xf32>
    %cst_26 = arith.constant 1.000000e+00 : f32
    %35 = vector.broadcast %cst_26 : f32 to vector<1x128xf32>
    %36 = arith.subf %35, %29 : vector<1x128xf32>
    %37 = arith.mulf %36, %34 : vector<1x128xf32>
    %38 = arith.mulf %29, %11 : vector<1x128xf32>
    %39 = arith.addf %37, %38 : vector<1x128xf32>
    %c0_27 = arith.constant 0 : index
    %c0_28 = arith.constant 0 : index
    %40 = vector.load %arg11[%c0_27, %c0_28] : memref<2x128xf32, #tpu.memory_space<vmem>>, vector<1x128xf32>
    tpu.vector_store %arg11[%c0_27, %c0_28], %39 {strides = array<i32>} : memref<2x128xf32, #tpu.memory_space<vmem>>, vector<1x128xf32>,
    %c0_29 = arith.constant 0 : index
    %c0_30 = arith.constant 0 : index
    %41 = vector.load %arg10[%c0_29, %c0_30] : memref<1x256xf32, #tpu.memory_space<vmem>>, vector<1x128xf32>
    tpu.vector_store %arg10[%c0_29, %c0_30], %39 {strides = array<i32>} : memref<1x256xf32, #tpu.memory_space<vmem>>, vector<1x128xf32>,
    %c1 = arith.constant 1 : index
    %c0_31 = arith.constant 0 : index
    %42 = vector.load %arg11[%c1, %c0_31] : memref<2x128xf32, #tpu.memory_space<vmem>>, vector<1x128xf32>
    %c0_32 = arith.constant 0 : index
    %c128_33 = arith.constant 128 : index
    %43 = vector.load %arg10[%c0_32, %c128_33] : memref<1x256xf32, #tpu.memory_space<vmem>>, vector<1x128xf32>
    tpu.vector_store %arg10[%c0_32, %c128_33], %42 {strides = array<i32>} : memref<1x256xf32, #tpu.memory_space<vmem>>, vector<1x128xf32>,
    %c0_34 = arith.constant 0 : index
    %c0_35 = arith.constant 0 : index
    %44 = vector.load %arg10[%c0_34, %c0_35] : memref<1x256xf32, #tpu.memory_space<vmem>>, vector<1x256xf32>
    %c0_36 = arith.constant 0 : index
    %c0_37 = arith.constant 0 : index
    %45 = vector.load %arg3[%c0_36, %c0_37] : memref<256x512xf32, #tpu.memory_space<vmem>>, vector<256x512xf32>
    %cst_38 = arith.constant dense<0.000000e+00> : vector<1x512xf32>
    %46 = tpu.matmul %44, %45, %cst_38 {dimension_numbers = #tpu.dot_dimension_numbers<[1], [0], [0], [1], [0, 0, 1, 1], [], []>} : vector<1x256xf32>, vector<256x512xf32>, vector<1x512xf32> -> vector<1x512xf32>
    %c0_39 = arith.constant 0 : index
    %c0_40 = arith.constant 0 : index
    %47 = vector.load %arg5[%c0_39, %c0_40] : memref<1x512xf32, #tpu.memory_space<vmem>>, vector<1x512xf32>
    %48 = arith.addf %46, %47 : vector<1x512xf32>
    %49 = vector.extract_strided_slice %48 {offsets = [0, 0], sizes = [1, 128], strides = [1, 1]} : vector<1x512xf32> to vector<1x128xf32>
    %50 = arith.negf %49 : vector<1x128xf32>
    %51 = math.exp %50 : vector<1x128xf32>
    %cst_41 = arith.constant 1.000000e+00 : f32
    %52 = vector.broadcast %cst_41 : f32 to vector<1x128xf32>
    %53 = arith.addf %52, %51 : vector<1x128xf32>
    %54 = arith.divf %52, %53 : vector<1x128xf32>
    %55 = vector.extract_strided_slice %48 {offsets = [0, 128], sizes = [1, 128], strides = [1, 1]} : vector<1x512xf32> to vector<1x128xf32>
    %56 = arith.negf %55 : vector<1x128xf32>
    %57 = math.exp %56 : vector<1x128xf32>
    %cst_42 = arith.constant 1.000000e+00 : f32
    %58 = vector.broadcast %cst_42 : f32 to vector<1x128xf32>
    %59 = arith.addf %58, %57 : vector<1x128xf32>
    %60 = arith.divf %58, %59 : vector<1x128xf32>
    %61 = vector.extract_strided_slice %48 {offsets = [0, 256], sizes = [1, 128], strides = [1, 1]} : vector<1x512xf32> to vector<1x128xf32>
    %62 = vector.extract_strided_slice %48 {offsets = [0, 384], sizes = [1, 128], strides = [1, 1]} : vector<1x512xf32> to vector<1x128xf32>
    %63 = arith.mulf %54, %62 : vector<1x128xf32>
    %64 = arith.addf %61, %63 : vector<1x128xf32>
    %65 = math.tanh %64 : vector<1x128xf32>
    %cst_43 = arith.constant 1.000000e+00 : f32
    %66 = vector.broadcast %cst_43 : f32 to vector<1x128xf32>
    %67 = arith.subf %66, %60 : vector<1x128xf32>
    %68 = arith.mulf %67, %65 : vector<1x128xf32>
    %69 = arith.mulf %60, %42 : vector<1x128xf32>
    %70 = arith.addf %68, %69 : vector<1x128xf32>
    %c1_44 = arith.constant 1 : index
    %c0_45 = arith.constant 0 : index
    %71 = vector.load %arg11[%c1_44, %c0_45] : memref<2x128xf32, #tpu.memory_space<vmem>>, vector<1x128xf32>
    tpu.vector_store %arg11[%c1_44, %c0_45], %70 {strides = array<i32>} : memref<2x128xf32, #tpu.memory_space<vmem>>, vector<1x128xf32>,
    %c1_i32 = arith.constant 1 : i32
    %c1_46 = arith.constant 1 : index
    %c0_47 = arith.constant 0 : index
    %72 = vector.load %arg11[%c1_46, %c0_47] : memref<2x128xf32, #tpu.memory_space<vmem>>, vector<1x128xf32>
    %c0_48 = arith.constant 0 : index
    %c0_49 = arith.constant 0 : index
    %73 = vector.load %arg6[%c0_48, %c0_49] : memref<128x128xf32, #tpu.memory_space<vmem>>, vector<128x128xf32>
    %cst_50 = arith.constant dense<0.000000e+00> : vector<1x128xf32>
    %74 = tpu.matmul %72, %73, %cst_50 {dimension_numbers = #tpu.dot_dimension_numbers<[1], [0], [0], [1], [0, 0, 1, 1], [], []>} : vector<1x128xf32>, vector<128x128xf32>, vector<1x128xf32> -> vector<1x128xf32>
    %c0_51 = arith.constant 0 : index
    %c0_52 = arith.constant 0 : index
    %75 = vector.load %arg7[%c0_51, %c0_52] : memref<1x128xf32, #tpu.memory_space<vmem>>, vector<1x128xf32>
    %76 = arith.addf %74, %75 : vector<1x128xf32>
    %cst_53 = arith.constant dense<0xFF800000> : vector<1xf32>
    %77 = vector.multi_reduction <maximumf>, %76, %cst_53 [1] : vector<1x128xf32> to vector<1xf32>
    %78 = vector.shape_cast %77 : vector<1xf32> to vector<1x1xf32>
    %79 = vector.broadcast %78 : vector<1x1xf32> to vector<1x128xf32>
    %80 = arith.subf %76, %79 : vector<1x128xf32>
    %81 = math.exp %80 : vector<1x128xf32>
    %cst_54 = arith.constant dense<0.000000e+00> : vector<1xf32>
    %82 = vector.multi_reduction <add>, %81, %cst_54 [1] : vector<1x128xf32> to vector<1xf32>
    %83 = vector.shape_cast %82 : vector<1xf32> to vector<1x1xf32>
    %84 = tpu.reciprocal %83 {approx = true} : vector<1x1xf32> -> vector<1x1xf32>
    %85 = vector.broadcast %84 : vector<1x1xf32> to vector<1x128xf32>
    %86 = arith.mulf %81, %85 : vector<1x128xf32>
    %87 = vector.extract_strided_slice %86 {offsets = [0, 0], sizes = [1, 16], strides = [1, 1]} : vector<1x128xf32> to vector<1x16xf32>
    %c0_55 = arith.constant 0 : index
    %c0_56 = arith.constant 0 : index
    %88 = vector.load %arg8[%c0_55, %c0_56] : memref<1x16xf32, #tpu.memory_space<vmem>>, vector<1x16xf32>
    tpu.vector_store %arg8[%c0_55, %c0_56], %87 {strides = array<i32>} : memref<1x16xf32, #tpu.memory_space<vmem>>, vector<1x16xf32>,
    %c0_57 = arith.constant 0 : index
    %c0_58 = arith.constant 0 : index
    %89 = vector.load %arg11[%c0_57, %c0_58] : memref<2x128xf32, #tpu.memory_space<vmem>>, vector<2x32xf32>
    %c0_59 = arith.constant 0 : index
    %c0_60 = arith.constant 0 : index
    %90 = vector.load %arg9[%c0_59, %c0_60] : memref<2x32xf32, #tpu.memory_space<vmem>>, vector<2x32xf32>
    tpu.vector_store %arg9[%c0_59, %c0_60], %89 {strides = array<i32>} : memref<2x32xf32, #tpu.memory_space<vmem>>, vector<2x32xf32>,
    return
  }
}

</mosaic_0001>

<llo_original>
// kernel: tpu_custom_call.1
$region0: #{tpu_custom_call.1}
  #allocation0 [shape = 'u32[]', space=smem, size = 0x4, offset = 0x4, fixed_abs, tag = 'smem constant byte address 0x4 - core index']
  #allocation1 [shape = 'u32[144,128]{1,0:T(1,128)}', space=vmem, size = 0x12000, scoped, tag = 'internal scratch']
  #allocation2 [shape = 'f32[1,256]{1,0:T(1,128)}', space=vmem, size = 0x400, scoped, tag = 'scratch operand']
  #allocation3 [shape = 'f32[2,128]{1,0:T(2,128)}', space=vmem, size = 0x400, scoped, tag = 'scratch operand']
  %s0 = inlined_call_operand.hbm [shape: f32[1,64], index: 0, kind: input, shape index: {}]
  %s1 = inlined_call_operand.hbm [shape: f32[2,32], index: 1, kind: input, shape index: {}]
  %s2 = inlined_call_operand.hbm [shape: f32[256,512], index: 2, kind: input, shape index: {}]
  %s3 = inlined_call_operand.hbm [shape: f32[256,512], index: 3, kind: input, shape index: {}]
  %s4 = inlined_call_operand.vmem [shape: f32[1,512], index: 4, kind: input, shape index: {}]
  %s5 = inlined_call_operand.vmem [shape: f32[1,512], index: 5, kind: input, shape index: {}]
  %s6 = inlined_call_operand.hbm [shape: f32[128,128], index: 6, kind: input, shape index: {}]
  %s7 = inlined_call_operand.vmem [shape: f32[1,128], index: 7, kind: input, shape index: {}]
  %s8 = inlined_call_operand.hbm [shape: f32[1,16], index: 8, kind: output, shape index: {0}]
  %s9 = inlined_call_operand.hbm [shape: f32[2,32], index: 9, kind: output, shape index: {1}]
  %10 = xla_tuple %s8, %s9
  %s11 = sld [smem:[#allocation0]]
  $region70: #{tpu_custom_call.1} parent=0
    _
  %s13 = ssub.s32 1, %s11
  %s14 = scalar_select 0, %s13, %s11
  $region1: #{tpu_custom_call.1} parent=0
    #allocation4 [shape = 'u8[512]{0}', space=vmem, size = 0x400, scoped, tag = 'input window, operand 0, single buffered']
    #allocation5 [shape = 's32[1]{0}', space=sflag, size = 0x4, scoped, tag = 'scoped memory for tpu_custom_call.1']
    #allocation6 [shape = 's32[1]{0}', space=sflag, size = 0x4, scoped, tag = 'scoped memory for tpu_custom_call.1']
    #allocation7 [shape = 'u8[1024]{0}', space=vmem, size = 0x400, scoped, tag = 'input window, operand 1, single buffered']
    #allocation8 [shape = 's32[1]{0}', space=sflag, size = 0x4, scoped, tag = 'scoped memory for tpu_custom_call.1']
    #allocation9 [shape = 'u8[524288]{0}', space=vmem, size = 0x80000, scoped, tag = 'input window, operand 2, single buffered']
    #allocation10 [shape = 'u8[524288]{0}', space=vmem, size = 0x80000, scoped, tag = 'input window, operand 3, single buffered']
    #allocation11 [shape = 's32[1]{0}', space=sflag, size = 0x4, scoped, tag = 'scoped memory for tpu_custom_call.1']
    #allocation12 [shape = 'u8[65536]{0}', space=vmem, size = 0x10000, scoped, tag = 'input window, operand 6, single buffered']
    #allocation13 [shape = 'u8[512]{0}', space=vmem, size = 0x400, scoped, tag = 'output window, operand 0, single buffered']
    #allocation14 [shape = 'u8[1024]{0}', space=vmem, size = 0x400, scoped, tag = 'output window, operand 1, single buffered']
    #allocation15 [shape = 's32[1]{0}', space=sflag, size = 0x4, scoped, tag = 'scoped memory for tpu_custom_call.1']
    %15 = vsyncpa [#allocation5], 0
    %16 = vsyncpa [#allocation8], 0
    %17 = vsyncpa [#allocation11], 0
    %18 = vsyncpa [#allocation6], 0
    %19 = vsyncpa [#allocation15], 0
    // Predicated region
    $region2: #{tpu_custom_call.1} parent=1 // pred_check
      _
    $region3: #{tpu_custom_call.1} parent=1 // pred_check_branch
      %21 = sbr.rel (0) target = $region5
    $region4: #{tpu_custom_call.1} parent=1 // pred_region
      %s23 = ssub.s32 16, 16
      %24 = vsyncadd [#allocation5], %s23
      %s26 = sshll.u32 [#allocation4], 4
      %s27 = int_to_ptr.vmem [resolvable:$true] %s26
      %29 = dma.hbm_to_vmem [thread:$0]  %s0, 16, %s27, [#allocation5]
    $region5: #{tpu_custom_call.1} parent=1 // pred_fallthru
      _
    // Predicated region
    $region6: #{tpu_custom_call.1} parent=1 // pred_check
      _
    $region7: #{tpu_custom_call.1} parent=1 // pred_check_branch
      %31 = sbr.rel (0) target = $region9
    $region8: #{tpu_custom_call.1} parent=1 // pred_region
      %s33 = ssub.s32 32, 32
      %34 = vsyncadd [#allocation8], %s33
      %s36 = sshll.u32 [#allocation7], 4
      %s37 = int_to_ptr.vmem [resolvable:$true] %s36
      %39 = dma.hbm_to_vmem [thread:$0]  %s1, 32, %s37, [#allocation8]
    $region9: #{tpu_custom_call.1} parent=1 // pred_fallthru
      _
    // Predicated region
    $region10: #{tpu_custom_call.1} parent=1 // pred_check
      _
    $region11: #{tpu_custom_call.1} parent=1 // pred_check_branch
      %41 = sbr.rel (0) target = $region13
    $region12: #{tpu_custom_call.1} parent=1 // pred_region
      %s43 = ssub.s32 16384, 16384
      %44 = vsyncadd [#allocation8], %s43
      %s45 = sshll.u32 [#allocation9], 4
      %s46 = int_to_ptr.vmem [resolvable:$true] %s45
      %51 = dma.hbm_to_vmem [thread:$0]  %s2, 16384, %s46, [#allocation8], 512, 512, 32
    $region13: #{tpu_custom_call.1} parent=1 // pred_fallthru
      _
    // Predicated region
    $region14: #{tpu_custom_call.1} parent=1 // pred_check
      _
    $region15: #{tpu_custom_call.1} parent=1 // pred_check_branch
      %53 = sbr.rel (0) target = $region17
    $region16: #{tpu_custom_call.1} parent=1 // pred_region
      %s55 = ssub.s32 16384, 16384
      %56 = vsyncadd [#allocation11], %s55
      %s57 = sshll.u32 [#allocation10], 4
      %s58 = int_to_ptr.vmem [resolvable:$true] %s57
      %63 = dma.hbm_to_vmem [thread:$0]  %s3, 16384, %s58, [#allocation11], 512, 512, 32
    $region17: #{tpu_custom_call.1} parent=1 // pred_fallthru
      _
    // Predicated region
    $region18: #{tpu_custom_call.1} parent=1 // pred_check
      _
    $region19: #{tpu_custom_call.1} parent=1 // pred_check_branch
      %65 = sbr.rel (0) target = $region21
    $region20: #{tpu_custom_call.1} parent=1 // pred_region
      _
    $region21: #{tpu_custom_call.1} parent=1 // pred_fallthru
      _
    // Predicated region
    $region22: #{tpu_custom_call.1} parent=1 // pred_check
      _
    $region23: #{tpu_custom_call.1} parent=1 // pred_check_branch
      %67 = sbr.rel (0) target = $region25
    $region24: #{tpu_custom_call.1} parent=1 // pred_region
      _
    $region25: #{tpu_custom_call.1} parent=1 // pred_fallthru
      _
    // Predicated region
    $region26: #{tpu_custom_call.1} parent=1 // pred_check
      _
    $region27: #{tpu_custom_call.1} parent=1 // pred_check_branch
      %69 = sbr.rel (0) target = $region29
    $region28: #{tpu_custom_call.1} parent=1 // pred_region
      %s71 = ssub.s32 2048, 2048
      %72 = vsyncadd [#allocation11], %s71
      %s73 = sshll.u32 [#allocation12], 4
      %s74 = int_to_ptr.vmem [resolvable:$true] %s73
      %79 = dma.hbm_to_vmem [thread:$0]  %s6, 2048, %s74, [#allocation11], 128, 128, 8
    $region29: #{tpu_custom_call.1} parent=1 // pred_fallthru
      _
    // Predicated region
    $region30: #{tpu_custom_call.1} parent=1 // pred_check
      _
    $region31: #{tpu_custom_call.1} parent=1 // pred_check_branch
      %81 = sbr.rel (0) target = $region33
    $region32: #{tpu_custom_call.1} parent=1 // pred_region
      _
    $region33: #{tpu_custom_call.1} parent=1 // pred_fallthru
      _
    // Predicated region
    $region34: #{tpu_custom_call.1} parent=1 // pred_check
      _
    $region35: #{tpu_custom_call.1} parent=1 // pred_check_branch
      %83 = sbr.rel (0) target = $region37
    $region36: #{tpu_custom_call.1} parent=1 // pred_region
      %84 = dma.done [#allocation5], 16
    $region37: #{tpu_custom_call.1} parent=1 // pred_fallthru
      _
    // Predicated region
    $region38: #{tpu_custom_call.1} parent=1 // pred_check
      _
    $region39: #{tpu_custom_call.1} parent=1 // pred_check_branch
      %86 = sbr.rel (0) target = $region41
    $region40: #{tpu_custom_call.1} parent=1 // pred_region
      %87 = dma.done [#allocation8], 32
    $region41: #{tpu_custom_call.1} parent=1 // pred_fallthru
      _
    // Predicated region
    $region42: #{tpu_custom_call.1} parent=1 // pred_check
      _
    $region43: #{tpu_custom_call.1} parent=1 // pred_check_branch
      %89 = sbr.rel (0) target = $region45
    $region44: #{tpu_custom_call.1} parent=1 // pred_region
      %90 = dma.done [#allocation8], 16384
    $region45: #{tpu_custom_call.1} parent=1 // pred_fallthru
      _
    // Predicated region
    $region46: #{tpu_custom_call.1} parent=1 // pred_check
      _
    $region47: #{tpu_custom_call.1} parent=1 // pred_check_branch
      %92 = sbr.rel (0) target = $region49
    $region48: #{tpu_custom_call.1} parent=1 // pred_region
      %93 = dma.done [#allocation11], 16384
    $region49: #{tpu_custom_call.1} parent=1 // pred_fallthru
      _
    // Predicated region
    $region50: #{tpu_custom_call.1} parent=1 // pred_check
      _
    $region51: #{tpu_custom_call.1} parent=1 // pred_check_branch
      %95 = sbr.rel (0) target = $region53
    $region52: #{tpu_custom_call.1} parent=1 // pred_region
      %96 = dma.done [#allocation11], 2048
    $region53: #{tpu_custom_call.1} parent=1 // pred_fallthru
      _
    %v97 = vlaneseq
    %vm98 = vcmp.ge.s32.totalorder %v97, 0
    %vm99 = vcmp.lt.s32.totalorder %v97, 256
    %vm100 = vmand %vm98, %vm99
    %101 = vst.msk [vmem:[#allocation2] sm:$0x3] %vm100, 0.0
    %102 = vst [vmem:[#allocation3] sm:$0x3] 0.0
    %v103 = vld [vmem:[#allocation7] sm:$0x3]
    %vm104 = vcmask 254976
    %105 = vst.msk [vmem:[#allocation3] sm:$0x3] %vm104, %v103
    %vm106 = vcmp.lt.s32.totalorder %v97, 128
    %vm107 = vmand %vm98, %vm106
    %108 = vst.msk [vmem:[#allocation2] sm:$0x1] %vm107, 0.0
    %v109 = vld [vmem:[#allocation4] sm:$0x1]
    %vm110 = vcmp.lt.s32.totalorder %v97, 64
    %vm111 = vmand %vm98, %vm110
    %112 = vst.msk [vmem:[#allocation2] sm:$0x1] %vm111, %v109
    %v113 = vld [vmem:[#allocation3] sm:$0x1]
    %114 = vst.msk [vmem:[#allocation2 + $0x1] sm:$0x1] %vm107, %v113
    %v115 = vld [vmem:[#allocation2] sm:$0x3]
    %v116 = vld [vmem:[#allocation9] sm:$0xff]
    %v117 = vld [vmem:[#allocation9 + $0x8] sm:$0xff]
    %v118 = vld [vmem:[#allocation9 + $0x10] sm:$0xff]
    %v119 = vld [vmem:[#allocation9 + $0x18] sm:$0xff]
    %v120 = vld [vmem:[#allocation9 + $0x20] sm:$0xff]
    %v121 = vld [vmem:[#allocation9 + $0x28] sm:$0xff]
    %v122 = vld [vmem:[#allocation9 + $0x30] sm:$0xff]
    %v123 = vld [vmem:[#allocation9 + $0x38] sm:$0xff]
    %v124 = vld [vmem:[#allocation9 + $0x40] sm:$0xff]
    %v125 = vld [vmem:[#allocation9 + $0x48] sm:$0xff]
    %v126 = vld [vmem:[#allocation9 + $0x50] sm:$0xff]
    %v127 = vld [vmem:[#allocation9 + $0x58] sm:$0xff]
    %v128 = vld [vmem:[#allocation9 + $0x60] sm:$0xff]
    %v129 = vld [vmem:[#allocation9 + $0x68] sm:$0xff]
    %v130 = vld [vmem:[#allocation9 + $0x70] sm:$0xff]
    %v131 = vld [vmem:[#allocation9 + $0x78] sm:$0xff]
    %v132 = vld [vmem:[#allocation9 + $0x80] sm:$0xff]
    %v133 = vld [vmem:[#allocation9 + $0x88] sm:$0xff]
    %v134 = vld [vmem:[#allocation9 + $0x90] sm:$0xff]
    %v135 = vld [vmem:[#allocation9 + $0x98] sm:$0xff]
    %v136 = vld [vmem:[#allocation9 + $0xa0] sm:$0xff]
    %v137 = vld [vmem:[#allocation9 + $0xa8] sm:$0xff]
    %v138 = vld [vmem:[#allocation9 + $0xb0] sm:$0xff]
    %v139 = vld [vmem:[#allocation9 + $0xb8] sm:$0xff]
    %v140 = vld [vmem:[#allocation9 + $0xc0] sm:$0xff]
    %v141 = vld [vmem:[#allocation9 + $0xc8] sm:$0xff]
    %v142 = vld [vmem:[#allocation9 + $0xd0] sm:$0xff]
    %v143 = vld [vmem:[#allocation9 + $0xd8] sm:$0xff]
    %v144 = vld [vmem:[#allocation9 + $0xe0] sm:$0xff]
    %v145 = vld [vmem:[#allocation9 + $0xe8] sm:$0xff]
    %v146 = vld [vmem:[#allocation9 + $0xf0] sm:$0xff]
    %v147 = vld [vmem:[#allocation9 + $0xf8] sm:$0xff]
    %v148 = vld [vmem:[#allocation9 + $0x100] sm:$0xff]
    %v149 = vld [vmem:[#allocation9 + $0x108] sm:$0xff]
    %v150 = vld [vmem:[#allocation9 + $0x110] sm:$0xff]
    %v151 = vld [vmem:[#allocation9 + $0x118] sm:$0xff]
    %v152 = vld [vmem:[#allocation9 + $0x120] sm:$0xff]
    %v153 = vld [vmem:[#allocation9 + $0x128] sm:$0xff]
    %v154 = vld [vmem:[#allocation9 + $0x130] sm:$0xff]
    %v155 = vld [vmem:[#allocation9 + $0x138] sm:$0xff]
    %v156 = vld [vmem:[#allocation9 + $0x140] sm:$0xff]
    %v157 = vld [vmem:[#allocation9 + $0x148] sm:$0xff]
    %v158 = vld [vmem:[#allocation9 + $0x150] sm:$0xff]
    %v159 = vld [vmem:[#allocation9 + $0x158] sm:$0xff]
    %v160 = vld [vmem:[#allocation9 + $0x160] sm:$0xff]
    %v161 = vld [vmem:[#allocation9 + $0x168] sm:$0xff]
    %v162 = vld [vmem:[#allocation9 + $0x170] sm:$0xff]
    %v163 = vld [vmem:[#allocation9 + $0x178] sm:$0xff]
    %v164 = vld [vmem:[#allocation9 + $0x180] sm:$0xff]
    %v165 = vld [vmem:[#allocation9 + $0x188] sm:$0xff]
    %v166 = vld [vmem:[#allocation9 + $0x190] sm:$0xff]
    %v167 = vld [vmem:[#allocation9 + $0x198] sm:$0xff]
    %v168 = vld [vmem:[#allocation9 + $0x1a0] sm:$0xff]
    %v169 = vld [vmem:[#allocation9 + $0x1a8] sm:$0xff]
    %v170 = vld [vmem:[#allocation9 + $0x1b0] sm:$0xff]
    %v171 = vld [vmem:[#allocation9 + $0x1b8] sm:$0xff]
    %v172 = vld [vmem:[#allocation9 + $0x1c0] sm:$0xff]
    %v173 = vld [vmem:[#allocation9 + $0x1c8] sm:$0xff]
    %v174 = vld [vmem:[#allocation9 + $0x1d0] sm:$0xff]
    %v175 = vld [vmem:[#allocation9 + $0x1d8] sm:$0xff]
    %v176 = vld [vmem:[#allocation9 + $0x1e0] sm:$0xff]
    %v177 = vld [vmem:[#allocation9 + $0x1e8] sm:$0xff]
    %v178 = vld [vmem:[#allocation9 + $0x1f0] sm:$0xff]
    %v179 = vld [vmem:[#allocation9 + $0x1f8] sm:$0xff]
    %v180 = vld [vmem:[#allocation9 + $0x200] sm:$0xff]
    %v181 = vld [vmem:[#allocation9 + $0x208] sm:$0xff]
    %v182 = vld [vmem:[#allocation9 + $0x210] sm:$0xff]
    %v183 = vld [vmem:[#allocation9 + $0x218] sm:$0xff]
    %v184 = vld [vmem:[#allocation9 + $0x220] sm:$0xff]
    %v185 = vld [vmem:[#allocation9 + $0x228] sm:$0xff]
    %v186 = vld [vmem:[#allocation9 + $0x230] sm:$0xff]
    %v187 = vld [vmem:[#allocation9 + $0x238] sm:$0xff]
    %v188 = vld [vmem:[#allocation9 + $0x240] sm:$0xff]
    %v189 = vld [vmem:[#allocation9 + $0x248] sm:$0xff]
    %v190 = vld [vmem:[#allocation9 + $0x250] sm:$0xff]
    %v191 = vld [vmem:[#allocation9 + $0x258] sm:$0xff]
    %v192 = vld [vmem:[#allocation9 + $0x260] sm:$0xff]
    %v193 = vld [vmem:[#allocation9 + $0x268] sm:$0xff]
    %v194 = vld [vmem:[#allocation9 + $0x270] sm:$0xff]
    %v195 = vld [vmem:[#allocation9 + $0x278] sm:$0xff]
    %v196 = vld [vmem:[#allocation9 + $0x280] sm:$0xff]
    %v197 = vld [vmem:[#allocation9 + $0x288] sm:$0xff]
    %v198 = vld [vmem:[#allocation9 + $0x290] sm:$0xff]
    %v199 = vld [vmem:[#allocation9 + $0x298] sm:$0xff]
    %v200 = vld [vmem:[#allocation9 + $0x2a0] sm:$0xff]
    %v201 = vld [vmem:[#allocation9 + $0x2a8] sm:$0xff]
    %v202 = vld [vmem:[#allocation9 + $0x2b0] sm:$0xff]
    %v203 = vld [vmem:[#allocation9 + $0x2b8] sm:$0xff]
    %v204 = vld [vmem:[#allocation9 + $0x2c0] sm:$0xff]
    %v205 = vld [vmem:[#allocation9 + $0x2c8] sm:$0xff]
    %v206 = vld [vmem:[#allocation9 + $0x2d0] sm:$0xff]
    %v207 = vld [vmem:[#allocation9 + $0x2d8] sm:$0xff]
    %v208 = vld [vmem:[#allocation9 + $0x2e0] sm:$0xff]
    %v209 = vld [vmem:[#allocation9 + $0x2e8] sm:$0xff]
    %v210 = vld [vmem:[#allocation9 + $0x2f0] sm:$0xff]
    %v211 = vld [vmem:[#allocation9 + $0x2f8] sm:$0xff]
    %v212 = vld [vmem:[#allocation9 + $0x300] sm:$0xff]
    %v213 = vld [vmem:[#allocation9 + $0x308] sm:$0xff]
    %v214 = vld [vmem:[#allocation9 + $0x310] sm:$0xff]
    %v215 = vld [vmem:[#allocation9 + $0x318] sm:$0xff]
    %v216 = vld [vmem:[#allocation9 + $0x320] sm:$0xff]
    %v217 = vld [vmem:[#allocation9 + $0x328] sm:$0xff]
    %v218 = vld [vmem:[#allocation9 + $0x330] sm:$0xff]
    %v219 = vld [vmem:[#allocation9 + $0x338] sm:$0xff]
    %v220 = vld [vmem:[#allocation9 + $0x340] sm:$0xff]
    %v221 = vld [vmem:[#allocation9 + $0x348] sm:$0xff]
    %v222 = vld [vmem:[#allocation9 + $0x350] sm:$0xff]
    %v223 = vld [vmem:[#allocation9 + $0x358] sm:$0xff]
    %v224 = vld [vmem:[#allocation9 + $0x360] sm:$0xff]
    %v225 = vld [vmem:[#allocation9 + $0x368] sm:$0xff]
    %v226 = vld [vmem:[#allocation9 + $0x370] sm:$0xff]
    %v227 = vld [vmem:[#allocation9 + $0x378] sm:$0xff]
    %v228 = vld [vmem:[#allocation9 + $0x380] sm:$0xff]
    %v229 = vld [vmem:[#allocation9 + $0x388] sm:$0xff]
    %v230 = vld [vmem:[#allocation9 + $0x390] sm:$0xff]
    %v231 = vld [vmem:[#allocation9 + $0x398] sm:$0xff]
    %v232 = vld [vmem:[#allocation9 + $0x3a0] sm:$0xff]
    %v233 = vld [vmem:[#allocation9 + $0x3a8] sm:$0xff]
    %v234 = vld [vmem:[#allocation9 + $0x3b0] sm:$0xff]
    %v235 = vld [vmem:[#allocation9 + $0x3b8] sm:$0xff]
    %v236 = vld [vmem:[#allocation9 + $0x3c0] sm:$0xff]
    %v237 = vld [vmem:[#allocation9 + $0x3c8] sm:$0xff]
    %v238 = vld [vmem:[#allocation9 + $0x3d0] sm:$0xff]
    %v239 = vld [vmem:[#allocation9 + $0x3d8] sm:$0xff]
    %v240 = vld [vmem:[#allocation9 + $0x3e0] sm:$0xff]
    %v241 = vld [vmem:[#allocation9 + $0x3e8] sm:$0xff]
    %v242 = vld [vmem:[#allocation9 + $0x3f0] sm:$0xff]
    %v243 = vld [vmem:[#allocation9 + $0x3f8] sm:$0xff]
    %v244 = vld [vmem:[%s4] sm:$0xf]
    %v246 = vlaneseq
    %v247 = vshrl.u32 %v246, 7
    %v248 = vsub.s32 0, %v247
    %v249 = vrot.slane %v115, %v248
    %v250 = vlaneseq
    %v251 = vshrl.u32 %v250, 7
    %v252 = vsub.s32 1, %v251
    %v253 = vrot.slane %v115, %v252
    %v257 = vlaneseq
    %v258 = vshrl.u32 %v257, 7
    %v259 = vsub.s32 0, %v258
    %v260 = vrot.slane %v244, %v259
    %v261 = vlaneseq
    %v262 = vshrl.u32 %v261, 7
    %v263 = vsub.s32 1, %v262
    %v264 = vrot.slane %v244, %v263
    %v265 = vlaneseq
    %v266 = vshrl.u32 %v265, 7
    %v267 = vsub.s32 2, %v266
    %v268 = vrot.slane %v244, %v267
    %v269 = vlaneseq
    %v270 = vshrl.u32 %v269, 7
    %v271 = vsub.s32 3, %v270
    %v272 = vrot.slane %v244, %v271
    %277 = vmatprep.subr.mxu0 %v177
    %278 = vmatpush1.msra.mxu0 %v176
    %279 = vmatprep.subr.mxu0 %v173
    %280 = vmatpush1.msra.mxu0 %v172
    %281 = vmatprep.subr.mxu0 %v169
    %282 = vmatpush1.msra.mxu0 %v168
    %283 = vmatprep.subr.mxu0 %v165
    %284 = vmatpush1.msra.mxu0 %v164
    %285 = vmatprep.subr.mxu0 %v161
    %286 = vmatpush1.msra.mxu0 %v160
    %287 = vmatprep.subr.mxu0 %v157
    %288 = vmatpush1.msra.mxu0 %v156
    %289 = vmatprep.subr.mxu0 %v153
    %290 = vmatpush1.msra.mxu0 %v152
    %291 = vmatprep.subr.mxu0 %v149
    %292 = vmatpush1.msra.mxu0 %v148
    %293 = vmatprep.subr.mxu0 %v145
    %294 = vmatpush1.msra.mxu0 %v144
    %295 = vmatprep.subr.mxu0 %v141
    %296 = vmatpush1.msra.mxu0 %v140
    %297 = vmatprep.subr.mxu0 %v137
    %298 = vmatpush1.msra.mxu0 %v136
    %299 = vmatprep.subr.mxu0 %v133
    %300 = vmatpush1.msra.mxu0 %v132
    %301 = vmatprep.subr.mxu0 %v129
    %302 = vmatpush1.msra.mxu0 %v128
    %303 = vmatprep.subr.mxu0 %v125
    %304 = vmatpush1.msra.mxu0 %v124
    %305 = vmatprep.subr.mxu0 %v121
    %306 = vmatpush1.msra.mxu0 %v120
    %307 = vmatprep.subr.mxu0 %v117
    %308 = vmatpush1.msra.mxu0 %v116
    %309 = vmatprep.subr.mxu0 %v241
    %310 = vmatpush2.msra.mxu0 %v240
    %311 = vmatprep.subr.mxu0 %v237
    %312 = vmatpush2.msra.mxu0 %v236
    %313 = vmatprep.subr.mxu0 %v233
    %314 = vmatpush2.msra.mxu0 %v232
    %315 = vmatprep.subr.mxu0 %v229
    %316 = vmatpush2.msra.mxu0 %v228
    %317 = vmatprep.subr.mxu0 %v225
    %318 = vmatpush2.msra.mxu0 %v224
    %319 = vmatprep.subr.mxu0 %v221
    %320 = vmatpush2.msra.mxu0 %v220
    %321 = vmatprep.subr.mxu0 %v217
    %322 = vmatpush2.msra.mxu0 %v216
    %323 = vmatprep.subr.mxu0 %v213
    %324 = vmatpush2.msra.mxu0 %v212
    %325 = vmatprep.subr.mxu0 %v209
    %326 = vmatpush2.msra.mxu0 %v208
    %327 = vmatprep.subr.mxu0 %v205
    %328 = vmatpush2.msra.mxu0 %v204
    %329 = vmatprep.subr.mxu0 %v201
    %330 = vmatpush2.msra.mxu0 %v200
    %331 = vmatprep.subr.mxu0 %v197
    %332 = vmatpush2.msra.mxu0 %v196
    %333 = vmatprep.subr.mxu0 %v193
    %334 = vmatpush2.msra.mxu0 %v192
    %335 = vmatprep.subr.mxu0 %v189
    %336 = vmatpush2.msra.mxu0 %v188
    %337 = vmatprep.subr.mxu0 %v185
    %338 = vmatpush2.msra.mxu0 %v184
    %339 = vmatprep.subr.mxu0 %v181
    %340 = vmatpush2.msra.mxu0 %v180
    %341 = vmatprep.mubr.f32.mxu0 %v253
    %342 = vmatmul.mubr.f32.gmra.mxu0 %v249
    %v343 = vpop.f32.mrf.mxu0
    %v344 = vadd.f32 %v260, %v343
    %v345 = vpop.f32.mrf.mxu0
    %v346 = vadd.f32 %v264, %v345
    %347 = vdwg.mxu0
    %348 = vmatprep.subr.mxu0 %v179
    %349 = vmatpush1.msra.mxu0 %v178
    %350 = vmatprep.subr.mxu0 %v175
    %351 = vmatpush1.msra.mxu0 %v174
    %352 = vmatprep.subr.mxu0 %v171
    %353 = vmatpush1.msra.mxu0 %v170
    %354 = vmatprep.subr.mxu0 %v167
    %355 = vmatpush1.msra.mxu0 %v166
    %356 = vmatprep.subr.mxu0 %v163
    %357 = vmatpush1.msra.mxu0 %v162
    %358 = vmatprep.subr.mxu0 %v159
    %359 = vmatpush1.msra.mxu0 %v158
    %360 = vmatprep.subr.mxu0 %v155
    %361 = vmatpush1.msra.mxu0 %v154
    %362 = vmatprep.subr.mxu0 %v151
    %363 = vmatpush1.msra.mxu0 %v150
    %364 = vmatprep.subr.mxu0 %v147
    %365 = vmatpush1.msra.mxu0 %v146
    %366 = vmatprep.subr.mxu0 %v143
    %367 = vmatpush1.msra.mxu0 %v142
    %368 = vmatprep.subr.mxu0 %v139
    %369 = vmatpush1.msra.mxu0 %v138
    %370 = vmatprep.subr.mxu0 %v135
    %371 = vmatpush1.msra.mxu0 %v134
    %372 = vmatprep.subr.mxu0 %v131
    %373 = vmatpush1.msra.mxu0 %v130
    %374 = vmatprep.subr.mxu0 %v127
    %375 = vmatpush1.msra.mxu0 %v126
    %376 = vmatprep.subr.mxu0 %v123
    %377 = vmatpush1.msra.mxu0 %v122
    %378 = vmatprep.subr.mxu0 %v119
    %379 = vmatpush1.msra.mxu0 %v118
    %380 = vmatprep.subr.mxu0 %v243
    %381 = vmatpush2.msra.mxu0 %v242
    %382 = vmatprep.subr.mxu0 %v239
    %383 = vmatpush2.msra.mxu0 %v238
    %384 = vmatprep.subr.mxu0 %v235
    %385 = vmatpush2.msra.mxu0 %v234
    %386 = vmatprep.subr.mxu0 %v231
    %387 = vmatpush2.msra.mxu0 %v230
    %388 = vmatprep.subr.mxu0 %v227
    %389 = vmatpush2.msra.mxu0 %v226
    %390 = vmatprep.subr.mxu0 %v223
    %391 = vmatpush2.msra.mxu0 %v222
    %392 = vmatprep.subr.mxu0 %v219
    %393 = vmatpush2.msra.mxu0 %v218
    %394 = vmatprep.subr.mxu0 %v215
    %395 = vmatpush2.msra.mxu0 %v214
    %396 = vmatprep.subr.mxu0 %v211
    %397 = vmatpush2.msra.mxu0 %v210
    %398 = vmatprep.subr.mxu0 %v207
    %399 = vmatpush2.msra.mxu0 %v206
    %400 = vmatprep.subr.mxu0 %v203
    %401 = vmatpush2.msra.mxu0 %v202
    %402 = vmatprep.subr.mxu0 %v199
    %403 = vmatpush2.msra.mxu0 %v198
    %404 = vmatprep.subr.mxu0 %v195
    %405 = vmatpush2.msra.mxu0 %v194
    %406 = vmatprep.subr.mxu0 %v191
    %407 = vmatpush2.msra.mxu0 %v190
    %408 = vmatprep.subr.mxu0 %v187
    %409 = vmatpush2.msra.mxu0 %v186
    %410 = vmatprep.subr.mxu0 %v183
    %411 = vmatpush2.msra.mxu0 %v182
    %412 = vmatprep.mubr.f32.mxu0 %v253
    %413 = vmatmul.mubr.f32.gmra.mxu0 %v249
    %v414 = vpop.f32.mrf.mxu0
    %v415 = vadd.f32 %v268, %v414
    %v416 = vpop.f32.mrf.mxu0
    %v417 = vadd.f32 %v272, %v416
    %418 = vdwg.mxu0
    %v419 = vxor.u32 %v344, 2147483648
    %v420 = vmul.f32 %v419, 1.442695
    %v421 = vpow.pop %v420
    %v422 = vadd.f32 %v421, 1.0
    %v423 = vrcp.pop %v422
    %v424 = vmul.f32 1.0, %v423
    %v425 = vxor.u32 %v346, 2147483648
    %v426 = vmul.f32 %v425, 1.442695
    %v427 = vpow.pop %v426
    %v428 = vadd.f32 %v427, 1.0
    %v429 = vrcp.pop %v428
    %v430 = vmul.f32 1.0, %v429
    %v431 = vmul.f32 %v424, %v417
    %v432 = vadd.f32 %v415, %v431
    %v433 = vtanh.pop %v432
    %v434 = vsub.f32 1.0, %v430
    %v435 = vmul.f32 %v434, %v433
    %v436 = vmul.f32 %v430, %v113
    %v437 = vadd.f32 %v435, %v436
    %438 = vst [vmem:[#allocation3] sm:$0x1] %v437
    %439 = vst.msk [vmem:[#allocation2] sm:$0x1] %vm107, %v437
    %v440 = vld [vmem:[#allocation3 + $0x1] sm:$0x1]
    %441 = vst.msk [vmem:[#allocation2 + $0x1] sm:$0x1] %vm107, %v440
    %v442 = vld [vmem:[#allocation2] sm:$0x3]
    %v443 = vld [vmem:[#allocation10] sm:$0xff]
    %v444 = vld [vmem:[#allocation10 + $0x8] sm:$0xff]
    %v445 = vld [vmem:[#allocation10 + $0x10] sm:$0xff]
    %v446 = vld [vmem:[#allocation10 + $0x18] sm:$0xff]
    %v447 = vld [vmem:[#allocation10 + $0x20] sm:$0xff]
    %v448 = vld [vmem:[#allocation10 + $0x28] sm:$0xff]
    %v449 = vld [vmem:[#allocation10 + $0x30] sm:$0xff]
    %v450 = vld [vmem:[#allocation10 + $0x38] sm:$0xff]
    %v451 = vld [vmem:[#allocation10 + $0x40] sm:$0xff]
    %v452 = vld [vmem:[#allocation10 + $0x48] sm:$0xff]
    %v453 = vld [vmem:[#allocation10 + $0x50] sm:$0xff]
    %v454 = vld [vmem:[#allocation10 + $0x58] sm:$0xff]
    %v455 = vld [vmem:[#allocation10 + $0x60] sm:$0xff]
    %v456 = vld [vmem:[#allocation10 + $0x68] sm:$0xff]
    %v457 = vld [vmem:[#allocation10 + $0x70] sm:$0xff]
    %v458 = vld [vmem:[#allocation10 + $0x78] sm:$0xff]
    %v459 = vld [vmem:[#allocation10 + $0x80] sm:$0xff]
    %v460 = vld [vmem:[#allocation10 + $0x88] sm:$0xff]
    %v461 = vld [vmem:[#allocation10 + $0x90] sm:$0xff]
    %v462 = vld [vmem:[#allocation10 + $0x98] sm:$0xff]
    %v463 = vld [vmem:[#allocation10 + $0xa0] sm:$0xff]
    %v464 = vld [vmem:[#allocation10 + $0xa8] sm:$0xff]
    %v465 = vld [vmem:[#allocation10 + $0xb0] sm:$0xff]
    %v466 = vld [vmem:[#allocation10 + $0xb8] sm:$0xff]
    %v467 = vld [vmem:[#allocation10 + $0xc0] sm:$0xff]
    %v468 = vld [vmem:[#allocation10 + $0xc8] sm:$0xff]
    %v469 = vld [vmem:[#allocation10 + $0xd0] sm:$0xff]
    %v470 = vld [vmem:[#allocation10 + $0xd8] sm:$0xff]
    %v471 = vld [vmem:[#allocation10 + $0xe0] sm:$0xff]
    %v472 = vld [vmem:[#allocation10 + $0xe8] sm:$0xff]
    %v473 = vld [vmem:[#allocation10 + $0xf0] sm:$0xff]
    %v474 = vld [vmem:[#allocation10 + $0xf8] sm:$0xff]
    %v475 = vld [vmem:[#allocation10 + $0x100] sm:$0xff]
    %v476 = vld [vmem:[#allocation10 + $0x108] sm:$0xff]
    %v477 = vld [vmem:[#allocation10 + $0x110] sm:$0xff]
    %v478 = vld [vmem:[#allocation10 + $0x118] sm:$0xff]
    %v479 = vld [vmem:[#allocation10 + $0x120] sm:$0xff]
    %v480 = vld [vmem:[#allocation10 + $0x128] sm:$0xff]
    %v481 = vld [vmem:[#allocation10 + $0x130] sm:$0xff]
    %v482 = vld [vmem:[#allocation10 + $0x138] sm:$0xff]
    %v483 = vld [vmem:[#allocation10 + $0x140] sm:$0xff]
    %v484 = vld [vmem:[#allocation10 + $0x148] sm:$0xff]
    %v485 = vld [vmem:[#allocation10 + $0x150] sm:$0xff]
    %v486 = vld [vmem:[#allocation10 + $0x158] sm:$0xff]
    %v487 = vld [vmem:[#allocation10 + $0x160] sm:$0xff]
    %v488 = vld [vmem:[#allocation10 + $0x168] sm:$0xff]
    %v489 = vld [vmem:[#allocation10 + $0x170] sm:$0xff]
    %v490 = vld [vmem:[#allocation10 + $0x178] sm:$0xff]
    %v491 = vld [vmem:[#allocation10 + $0x180] sm:$0xff]
    %v492 = vld [vmem:[#allocation10 + $0x188] sm:$0xff]
    %v493 = vld [vmem:[#allocation10 + $0x190] sm:$0xff]
    %v494 = vld [vmem:[#allocation10 + $0x198] sm:$0xff]
    %v495 = vld [vmem:[#allocation10 + $0x1a0] sm:$0xff]
    %v496 = vld [vmem:[#allocation10 + $0x1a8] sm:$0xff]
    %v497 = vld [vmem:[#allocation10 + $0x1b0] sm:$0xff]
    %v498 = vld [vmem:[#allocation10 + $0x1b8] sm:$0xff]
    %v499 = vld [vmem:[#allocation10 + $0x1c0] sm:$0xff]
    %v500 = vld [vmem:[#allocation10 + $0x1c8] sm:$0xff]
    %v501 = vld [vmem:[#allocation10 + $0x1d0] sm:$0xff]
    %v502 = vld [vmem:[#allocation10 + $0x1d8] sm:$0xff]
    %v503 = vld [vmem:[#allocation10 + $0x1e0] sm:$0xff]
    %v504 = vld [vmem:[#allocation10 + $0x1e8] sm:$0xff]
    %v505 = vld [vmem:[#allocation10 + $0x1f0] sm:$0xff]
    %v506 = vld [vmem:[#allocation10 + $0x1f8] sm:$0xff]
    %v507 = vld [vmem:[#allocation10 + $0x200] sm:$0xff]
    %v508 = vld [vmem:[#allocation10 + $0x208] sm:$0xff]
    %v509 = vld [vmem:[#allocation10 + $0x210] sm:$0xff]
    %v510 = vld [vmem:[#allocation10 + $0x218] sm:$0xff]
    %v511 = vld [vmem:[#allocation10 + $0x220] sm:$0xff]
    %v512 = vld [vmem:[#allocation10 + $0x228] sm:$0xff]
    %v513 = vld [vmem:[#allocation10 + $0x230] sm:$0xff]
    %v514 = vld [vmem:[#allocation10 + $0x238] sm:$0xff]
    %v515 = vld [vmem:[#allocation10 + $0x240] sm:$0xff]
    %v516 = vld [vmem:[#allocation10 + $0x248] sm:$0xff]
    %v517 = vld [vmem:[#allocation10 + $0x250] sm:$0xff]
    %v518 = vld [vmem:[#allocation10 + $0x258] sm:$0xff]
    %v519 = vld [vmem:[#allocation10 + $0x260] sm:$0xff]
    %v520 = vld [vmem:[#allocation10 + $0x268] sm:$0xff]
    %v521 = vld [vmem:[#allocation10 + $0x270] sm:$0xff]
    %v522 = vld [vmem:[#allocation10 + $0x278] sm:$0xff]
    %v523 = vld [vmem:[#allocation10 + $0x280] sm:$0xff]
    %v524 = vld [vmem:[#allocation10 + $0x288] sm:$0xff]
    %v525 = vld [vmem:[#allocation10 + $0x290] sm:$0xff]
    %v526 = vld [vmem:[#allocation10 + $0x298] sm:$0xff]
    %v527 = vld [vmem:[#allocation10 + $0x2a0] sm:$0xff]
    %v528 = vld [vmem:[#allocation10 + $0x2a8] sm:$0xff]
    %v529 = vld [vmem:[#allocation10 + $0x2b0] sm:$0xff]
    %v530 = vld [vmem:[#allocation10 + $0x2b8] sm:$0xff]
    %v531 = vld [vmem:[#allocation10 + $0x2c0] sm:$0xff]
    %v532 = vld [vmem:[#allocation10 + $0x2c8] sm:$0xff]
    %v533 = vld [vmem:[#allocation10 + $0x2d0] sm:$0xff]
    %v534 = vld [vmem:[#allocation10 + $0x2d8] sm:$0xff]
    %v535 = vld [vmem:[#allocation10 + $0x2e0] sm:$0xff]
    %v536 = vld [vmem:[#allocation10 + $0x2e8] sm:$0xff]
    %v537 = vld [vmem:[#allocation10 + $0x2f0] sm:$0xff]
    %v538 = vld [vmem:[#allocation10 + $0x2f8] sm:$0xff]
    %v539 = vld [vmem:[#allocation10 + $0x300] sm:$0xff]
    %v540 = vld [vmem:[#allocation10 + $0x308] sm:$0xff]
    %v541 = vld [vmem:[#allocation10 + $0x310] sm:$0xff]
    %v542 = vld [vmem:[#allocation10 + $0x318] sm:$0xff]
    %v543 = vld [vmem:[#allocation10 + $0x320] sm:$0xff]
    %v544 = vld [vmem:[#allocation10 + $0x328] sm:$0xff]
    %v545 = vld [vmem:[#allocation10 + $0x330] sm:$0xff]
    %v546 = vld [vmem:[#allocation10 + $0x338] sm:$0xff]
    %v547 = vld [vmem:[#allocation10 + $0x340] sm:$0xff]
    %v548 = vld [vmem:[#allocation10 + $0x348] sm:$0xff]
    %v549 = vld [vmem:[#allocation10 + $0x350] sm:$0xff]
    %v550 = vld [vmem:[#allocation10 + $0x358] sm:$0xff]
    %v551 = vld [vmem:[#allocation10 + $0x360] sm:$0xff]
    %v552 = vld [vmem:[#allocation10 + $0x368] sm:$0xff]
    %v553 = vld [vmem:[#allocation10 + $0x370] sm:$0xff]
    %v554 = vld [vmem:[#allocation10 + $0x378] sm:$0xff]
    %v555 = vld [vmem:[#allocation10 + $0x380] sm:$0xff]
    %v556 = vld [vmem:[#allocation10 + $0x388] sm:$0xff]
    %v557 = vld [vmem:[#allocation10 + $0x390] sm:$0xff]
    %v558 = vld [vmem:[#allocation10 + $0x398] sm:$0xff]
    %v559 = vld [vmem:[#allocation10 + $0x3a0] sm:$0xff]
    %v560 = vld [vmem:[#allocation10 + $0x3a8] sm:$0xff]
    %v561 = vld [vmem:[#allocation10 + $0x3b0] sm:$0xff]
    %v562 = vld [vmem:[#allocation10 + $0x3b8] sm:$0xff]
    %v563 = vld [vmem:[#allocation10 + $0x3c0] sm:$0xff]
    %v564 = vld [vmem:[#allocation10 + $0x3c8] sm:$0xff]
    %v565 = vld [vmem:[#allocation10 + $0x3d0] sm:$0xff]
    %v566 = vld [vmem:[#allocation10 + $0x3d8] sm:$0xff]
    %v567 = vld [vmem:[#allocation10 + $0x3e0] sm:$0xff]
    %v568 = vld [vmem:[#allocation10 + $0x3e8] sm:$0xff]
    %v569 = vld [vmem:[#allocation10 + $0x3f0] sm:$0xff]
    %v570 = vld [vmem:[#allocation10 + $0x3f8] sm:$0xff]
    %v571 = vld [vmem:[%s5] sm:$0xf]
    %v573 = vlaneseq
    %v574 = vshrl.u32 %v573, 7
    %v575 = vsub.s32 0, %v574
    %v576 = vrot.slane %v442, %v575
    %v577 = vlaneseq
    %v578 = vshrl.u32 %v577, 7
    %v579 = vsub.s32 1, %v578
    %v580 = vrot.slane %v442, %v579
    %v584 = vlaneseq
    %v585 = vshrl.u32 %v584, 7
    %v586 = vsub.s32 0, %v585
    %v587 = vrot.slane %v571, %v586
    %v588 = vlaneseq
    %v589 = vshrl.u32 %v588, 7
    %v590 = vsub.s32 1, %v589
    %v591 = vrot.slane %v571, %v590
    %v592 = vlaneseq
    %v593 = vshrl.u32 %v592, 7
    %v594 = vsub.s32 2, %v593
    %v595 = vrot.slane %v571, %v594
    %v596 = vlaneseq
    %v597 = vshrl.u32 %v596, 7
    %v598 = vsub.s32 3, %v597
    %v599 = vrot.slane %v571, %v598
    %604 = vmatprep.subr.mxu0 %v504
    %605 = vmatpush1.msra.mxu0 %v503
    %606 = vmatprep.subr.mxu0 %v500
    %607 = vmatpush1.msra.mxu0 %v499
    %608 = vmatprep.subr.mxu0 %v496
    %609 = vmatpush1.msra.mxu0 %v495
    %610 = vmatprep.subr.mxu0 %v492
    %611 = vmatpush1.msra.mxu0 %v491
    %612 = vmatprep.subr.mxu0 %v488
    %613 = vmatpush1.msra.mxu0 %v487
    %614 = vmatprep.subr.mxu0 %v484
    %615 = vmatpush1.msra.mxu0 %v483
    %616 = vmatprep.subr.mxu0 %v480
    %617 = vmatpush1.msra.mxu0 %v479
    %618 = vmatprep.subr.mxu0 %v476
    %619 = vmatpush1.msra.mxu0 %v475
    %620 = vmatprep.subr.mxu0 %v472
    %621 = vmatpush1.msra.mxu0 %v471
    %622 = vmatprep.subr.mxu0 %v468
    %623 = vmatpush1.msra.mxu0 %v467
    %624 = vmatprep.subr.mxu0 %v464
    %625 = vmatpush1.msra.mxu0 %v463
    %626 = vmatprep.subr.mxu0 %v460
    %627 = vmatpush1.msra.mxu0 %v459
    %628 = vmatprep.subr.mxu0 %v456
    %629 = vmatpush1.msra.mxu0 %v455
    %630 = vmatprep.subr.mxu0 %v452
    %631 = vmatpush1.msra.mxu0 %v451
    %632 = vmatprep.subr.mxu0 %v448
    %633 = vmatpush1.msra.mxu0 %v447
    %634 = vmatprep.subr.mxu0 %v444
    %635 = vmatpush1.msra.mxu0 %v443
    %636 = vmatprep.subr.mxu0 %v568
    %637 = vmatpush2.msra.mxu0 %v567
    %638 = vmatprep.subr.mxu0 %v564
    %639 = vmatpush2.msra.mxu0 %v563
    %640 = vmatprep.subr.mxu0 %v560
    %641 = vmatpush2.msra.mxu0 %v559
    %642 = vmatprep.subr.mxu0 %v556
    %643 = vmatpush2.msra.mxu0 %v555
    %644 = vmatprep.subr.mxu0 %v552
    %645 = vmatpush2.msra.mxu0 %v551
    %646 = vmatprep.subr.mxu0 %v548
    %647 = vmatpush2.msra.mxu0 %v547
    %648 = vmatprep.subr.mxu0 %v544
    %649 = vmatpush2.msra.mxu0 %v543
    %650 = vmatprep.subr.mxu0 %v540
    %651 = vmatpush2.msra.mxu0 %v539
    %652 = vmatprep.subr.mxu0 %v536
    %653 = vmatpush2.msra.mxu0 %v535
    %654 = vmatprep.subr.mxu0 %v532
    %655 = vmatpush2.msra.mxu0 %v531
    %656 = vmatprep.subr.mxu0 %v528
    %657 = vmatpush2.msra.mxu0 %v527
    %658 = vmatprep.subr.mxu0 %v524
    %659 = vmatpush2.msra.mxu0 %v523
    %660 = vmatprep.subr.mxu0 %v520
    %661 = vmatpush2.msra.mxu0 %v519
    %662 = vmatprep.subr.mxu0 %v516
    %663 = vmatpush2.msra.mxu0 %v515
    %664 = vmatprep.subr.mxu0 %v512
    %665 = vmatpush2.msra.mxu0 %v511
    %666 = vmatprep.subr.mxu0 %v508
    %667 = vmatpush2.msra.mxu0 %v507
    %668 = vmatprep.mubr.f32.mxu0 %v580
    %669 = vmatmul.mubr.f32.gmra.mxu0 %v576
    %v670 = vpop.f32.mrf.mxu0
    %v671 = vadd.f32 %v587, %v670
    %v672 = vpop.f32.mrf.mxu0
    %v673 = vadd.f32 %v591, %v672
    %674 = vdwg.mxu0
    %675 = vmatprep.subr.mxu0 %v506
    %676 = vmatpush1.msra.mxu0 %v505
    %677 = vmatprep.subr.mxu0 %v502
    %678 = vmatpush1.msra.mxu0 %v501
    %679 = vmatprep.subr.mxu0 %v498
    %680 = vmatpush1.msra.mxu0 %v497
    %681 = vmatprep.subr.mxu0 %v494
    %682 = vmatpush1.msra.mxu0 %v493
    %683 = vmatprep.subr.mxu0 %v490
    %684 = vmatpush1.msra.mxu0 %v489
    %685 = vmatprep.subr.mxu0 %v486
    %686 = vmatpush1.msra.mxu0 %v485
    %687 = vmatprep.subr.mxu0 %v482
    %688 = vmatpush1.msra.mxu0 %v481
    %689 = vmatprep.subr.mxu0 %v478
    %690 = vmatpush1.msra.mxu0 %v477
    %691 = vmatprep.subr.mxu0 %v474
    %692 = vmatpush1.msra.mxu0 %v473
    %693 = vmatprep.subr.mxu0 %v470
    %694 = vmatpush1.msra.mxu0 %v469
    %695 = vmatprep.subr.mxu0 %v466
    %696 = vmatpush1.msra.mxu0 %v465
    %697 = vmatprep.subr.mxu0 %v462
    %698 = vmatpush1.msra.mxu0 %v461
    %699 = vmatprep.subr.mxu0 %v458
    %700 = vmatpush1.msra.mxu0 %v457
    %701 = vmatprep.subr.mxu0 %v454
    %702 = vmatpush1.msra.mxu0 %v453
    %703 = vmatprep.subr.mxu0 %v450
    %704 = vmatpush1.msra.mxu0 %v449
    %705 = vmatprep.subr.mxu0 %v446
    %706 = vmatpush1.msra.mxu0 %v445
    %707 = vmatprep.subr.mxu0 %v570
    %708 = vmatpush2.msra.mxu0 %v569
    %709 = vmatprep.subr.mxu0 %v566
    %710 = vmatpush2.msra.mxu0 %v565
    %711 = vmatprep.subr.mxu0 %v562
    %712 = vmatpush2.msra.mxu0 %v561
    %713 = vmatprep.subr.mxu0 %v558
    %714 = vmatpush2.msra.mxu0 %v557
    %715 = vmatprep.subr.mxu0 %v554
    %716 = vmatpush2.msra.mxu0 %v553
    %717 = vmatprep.subr.mxu0 %v550
    %718 = vmatpush2.msra.mxu0 %v549
    %719 = vmatprep.subr.mxu0 %v546
    %720 = vmatpush2.msra.mxu0 %v545
    %721 = vmatprep.subr.mxu0 %v542
    %722 = vmatpush2.msra.mxu0 %v541
    %723 = vmatprep.subr.mxu0 %v538
    %724 = vmatpush2.msra.mxu0 %v537
    %725 = vmatprep.subr.mxu0 %v534
    %726 = vmatpush2.msra.mxu0 %v533
    %727 = vmatprep.subr.mxu0 %v530
    %728 = vmatpush2.msra.mxu0 %v529
    %729 = vmatprep.subr.mxu0 %v526
    %730 = vmatpush2.msra.mxu0 %v525
    %731 = vmatprep.subr.mxu0 %v522
    %732 = vmatpush2.msra.mxu0 %v521
    %733 = vmatprep.subr.mxu0 %v518
    %734 = vmatpush2.msra.mxu0 %v517
    %735 = vmatprep.subr.mxu0 %v514
    %736 = vmatpush2.msra.mxu0 %v513
    %737 = vmatprep.subr.mxu0 %v510
    %738 = vmatpush2.msra.mxu0 %v509
    %739 = vmatprep.mubr.f32.mxu0 %v580
    %740 = vmatmul.mubr.f32.gmra.mxu0 %v576
    %v741 = vpop.f32.mrf.mxu0
    %v742 = vadd.f32 %v595, %v741
    %v743 = vpop.f32.mrf.mxu0
    %v744 = vadd.f32 %v599, %v743
    %745 = vdwg.mxu0
    %v746 = vxor.u32 %v671, 2147483648
    %v747 = vmul.f32 %v746, 1.442695
    %v748 = vpow.pop %v747
    %v749 = vadd.f32 %v748, 1.0
    %v750 = vrcp.pop %v749
    %v751 = vmul.f32 1.0, %v750
    %v752 = vxor.u32 %v673, 2147483648
    %v753 = vmul.f32 %v752, 1.442695
    %v754 = vpow.pop %v753
    %v755 = vadd.f32 %v754, 1.0
    %v756 = vrcp.pop %v755
    %v757 = vmul.f32 1.0, %v756
    %v758 = vmul.f32 %v751, %v744
    %v759 = vadd.f32 %v742, %v758
    %v760 = vtanh.pop %v759
    %v761 = vsub.f32 1.0, %v757
    %v762 = vmul.f32 %v761, %v760
    %v763 = vmul.f32 %v757, %v440
    %v764 = vadd.f32 %v762, %v763
    %765 = vst [vmem:[#allocation3 + $0x1] sm:$0x1] %v764
    %v766 = vld [vmem:[#allocation3 + $0x1] sm:$0x1]
    %v767 = vld [vmem:[#allocation12] sm:$0xff]
    %v768 = vld [vmem:[#allocation12 + $0x8] sm:$0xff]
    %v769 = vld [vmem:[#allocation12 + $0x10] sm:$0xff]
    %v770 = vld [vmem:[#allocation12 + $0x18] sm:$0xff]
    %v771 = vld [vmem:[#allocation12 + $0x20] sm:$0xff]
    %v772 = vld [vmem:[#allocation12 + $0x28] sm:$0xff]
    %v773 = vld [vmem:[#allocation12 + $0x30] sm:$0xff]
    %v774 = vld [vmem:[#allocation12 + $0x38] sm:$0xff]
    %v775 = vld [vmem:[#allocation12 + $0x40] sm:$0xff]
    %v776 = vld [vmem:[#allocation12 + $0x48] sm:$0xff]
    %v777 = vld [vmem:[#allocation12 + $0x50] sm:$0xff]
    %v778 = vld [vmem:[#allocation12 + $0x58] sm:$0xff]
    %v779 = vld [vmem:[#allocation12 + $0x60] sm:$0xff]
    %v780 = vld [vmem:[#allocation12 + $0x68] sm:$0xff]
    %v781 = vld [vmem:[#allocation12 + $0x70] sm:$0xff]
    %v782 = vld [vmem:[#allocation12 + $0x78] sm:$0xff]
    %v783 = vld [vmem:[%s7] sm:$0x1]
    %784 = vmatprep.subr.mxu0 0.0
    %785 = vmatpush1.msra.mxu0 %v782
    %786 = vmatprep.subr.mxu0 0.0
    %787 = vmatpush1.msra.mxu0 %v781
    %788 = vmatprep.subr.mxu0 0.0
    %789 = vmatpush1.msra.mxu0 %v780
    %790 = vmatprep.subr.mxu0 0.0
    %791 = vmatpush1.msra.mxu0 %v779
    %792 = vmatprep.subr.mxu0 0.0
    %793 = vmatpush1.msra.mxu0 %v778
    %794 = vmatprep.subr.mxu0 0.0
    %795 = vmatpush1.msra.mxu0 %v777
    %796 = vmatprep.subr.mxu0 0.0
    %797 = vmatpush1.msra.mxu0 %v776
    %798 = vmatprep.subr.mxu0 0.0
    %799 = vmatpush1.msra.mxu0 %v775
    %800 = vmatprep.subr.mxu0 0.0
    %801 = vmatpush1.msra.mxu0 %v774
    %802 = vmatprep.subr.mxu0 0.0
    %803 = vmatpush1.msra.mxu0 %v773
    %804 = vmatprep.subr.mxu0 0.0
    %805 = vmatpush1.msra.mxu0 %v772
    %806 = vmatprep.subr.mxu0 0.0
    %807 = vmatpush1.msra.mxu0 %v771
    %808 = vmatprep.subr.mxu0 0.0
    %809 = vmatpush1.msra.mxu0 %v770
    %810 = vmatprep.subr.mxu0 0.0
    %811 = vmatpush1.msra.mxu0 %v769
    %812 = vmatprep.subr.mxu0 0.0
    %813 = vmatpush1.msra.mxu0 %v768
    %814 = vmatprep.subr.mxu0 0.0
    %815 = vmatpush1.msra.mxu0 %v767
    %816 = vmatprep.subr.mxu0 0.0
    %817 = vmatpush2.msra.mxu0 0.0
    %818 = vmatprep.subr.mxu0 0.0
    %819 = vmatpush2.msra.mxu0 0.0
    %820 = vmatprep.subr.mxu0 0.0
    %821 = vmatpush2.msra.mxu0 0.0
    %822 = vmatprep.subr.mxu0 0.0
    %823 = vmatpush2.msra.mxu0 0.0
    %824 = vmatprep.subr.mxu0 0.0
    %825 = vmatpush2.msra.mxu0 0.0
    %826 = vmatprep.subr.mxu0 0.0
    %827 = vmatpush2.msra.mxu0 0.0
    %828 = vmatprep.subr.mxu0 0.0
    %829 = vmatpush2.msra.mxu0 0.0
    %830 = vmatprep.subr.mxu0 0.0
    %831 = vmatpush2.msra.mxu0 0.0
    %832 = vmatprep.subr.mxu0 0.0
    %833 = vmatpush2.msra.mxu0 0.0
    %834 = vmatprep.subr.mxu0 0.0
    %835 = vmatpush2.msra.mxu0 0.0
    %836 = vmatprep.subr.mxu0 0.0
    %837 = vmatpush2.msra.mxu0 0.0
    %838 = vmatprep.subr.mxu0 0.0
    %839 = vmatpush2.msra.mxu0 0.0
    %840 = vmatprep.subr.mxu0 0.0
    %841 = vmatpush2.msra.mxu0 0.0
    %842 = vmatprep.subr.mxu0 0.0
    %843 = vmatpush2.msra.mxu0 0.0
    %844 = vmatprep.subr.mxu0 0.0
    %845 = vmatpush2.msra.mxu0 0.0
    %846 = vmatprep.subr.mxu0 0.0
    %847 = vmatpush2.msra.mxu0 0.0
    %848 = vmatprep.mubr.f32.mxu0 0.0
    %849 = vmatmul.mubr.f32.gmra.mxu0 %v766
    %v850 = vpop.f32.mrf.mxu0
    %v851 = vadd.f32 %v783, %v850
    %v852 = vpop.f32.mrf.mxu0
    %853 = vdwg.mxu0
    %vm854 = vcmask 1040384
    %v855 = vsel %vm854, %v851, -inf
    %856 = vmax.xlane.f32.xlu0 %v855
    %v857 = vpop.xlane.xlu0 %856
    %v858 = vsub.f32 %v851, %v857
    %v859 = vmul.f32 %v858, 1.442695
    %v860 = vpow.pop %v859
    %v861 = vsel %vm854, %v860, 0.0
    %862 = vadd.xlane.f32.xlu0 %v861
    %v863 = vpop.xlane.xlu0 %862
    %v864 = vrcp.pop %v863
    %v865 = vmul.f32 %v860, %v864
    %vm866 = vcmask 122880
    %867 = vst.msk [vmem:[#allocation13] sm:$0x1] %vm866, %v865
    %v868 = vld [vmem:[#allocation3] sm:$0x3]
    %869 = vst.msk [vmem:[#allocation14] sm:$0x3] %vm104, %v868
    // Predicated region
    $region54: #{tpu_custom_call.1} parent=1 // pred_check
      _
    $region55: #{tpu_custom_call.1} parent=1 // pred_check_branch
      %871 = sbr.rel (0) target = $region57
    $region56: #{tpu_custom_call.1} parent=1 // pred_region
      %s873 = ssub.s32 16, 16
      %874 = vsyncadd [#allocation6], %s873
      %s876 = sshll.u32 [#allocation13], 4
      %s877 = int_to_ptr.vmem [resolvable:$true] %s876
      %879 = dma.vmem_to_hbm [thread:$0]  %s877, 16, %s8, [#allocation6]
    $region57: #{tpu_custom_call.1} parent=1 // pred_fallthru
      _
    // Predicated region
    $region58: #{tpu_custom_call.1} parent=1 // pred_check
      _
    $region59: #{tpu_custom_call.1} parent=1 // pred_check_branch
      %881 = sbr.rel (0) target = $region61
    $region60: #{tpu_custom_call.1} parent=1 // pred_region
      %s883 = ssub.s32 32, 32
      %884 = vsyncadd [#allocation15], %s883
      %s886 = sshll.u32 [#allocation14], 4
      %s887 = int_to_ptr.vmem [resolvable:$true] %s886
      %889 = dma.vmem_to_hbm [thread:$0]  %s887, 32, %s9, [#allocation15]
    $region61: #{tpu_custom_call.1} parent=1 // pred_fallthru
      _
    // Predicated region
    $region62: #{tpu_custom_call.1} parent=1 // pred_check
      _
    $region63: #{tpu_custom_call.1} parent=1 // pred_check_branch
      %891 = sbr.rel (0) target = $region65
    $region64: #{tpu_custom_call.1} parent=1 // pred_region
      %892 = dma.done [#allocation6], 16
    $region65: #{tpu_custom_call.1} parent=1 // pred_fallthru
      _
    // Predicated region
    $region66: #{tpu_custom_call.1} parent=1 // pred_check
      _
    $region67: #{tpu_custom_call.1} parent=1 // pred_check_branch
      %894 = sbr.rel (0) target = $region69
    $region68: #{tpu_custom_call.1} parent=1 // pred_region
      %895 = dma.done [#allocation15], 32
    $region69: #{tpu_custom_call.1} parent=1 // pred_fallthru
      _
    %896 = vsyncpa [#allocation5], 1
    %897 = vsyncpa [#allocation8], 1
    %898 = vsyncpa [#allocation11], 1
    %899 = vsyncpa [#allocation6], 1
    %900 = vsyncpa [#allocation15], 1

</llo_original>
